<compile_context>
chip_gen: v5e
topology: v5e:2x2
jax: 0.10.0
libtpu: 0.0.40
codegen_flags: <defaults>
</compile_context>

<pallas_src>
import functools

import jax
import jax.numpy as jnp
from jax.experimental import pallas as pl
from jax.experimental.pallas import tpu as pltpu

BN_EPS = 1e-5          # nn.BatchNorm1d default eps
_MAX_SLICES = 128      # cap on the statically unrolled 128-lane fold loop


def _ca_kernel(x_ref, w1_ref, b1_ref, w2_ref, b2_ref, gamma_ref, beta_ref,
               out_ref, acc_ref, *, hw, tile_hw, lane_w, num_blocks):
    """Tiled global-average-pool with fused Linear/ReLU/Linear/BatchNorm1d."""
    k = pl.program_id(0)
    n_slices = tile_hw // lane_w
    has_tail = (num_blocks * tile_hw) > hw      # static Python bool

    def partial_sum(masked):
        """Fold this block's tile_hw lanes into a (B, C, lane_w) vreg carry."""
        start = k * tile_hw
        lane = (jax.lax.broadcasted_iota(jnp.int32, (1, 1, lane_w), 2)
                if masked else None)
        p = None
        for j in range(n_slices):               # static unroll: pure VPU adds
            sl = x_ref[:, :, j * lane_w:(j + 1) * lane_w].astype(jnp.float32)
            if masked:
                sl = jnp.where(start + j * lane_w + lane < hw, sl, 0.0)
            p = sl if p is None else p + sl
        return p

    def accumulate(p):
        @pl.when(k == 0)
        def _init():
            acc_ref[...] = p                    # init with first block

        @pl.when(k > 0)
        def _add():
            acc_ref[...] += p

    if has_tail and num_blocks > 1:
        # Interior blocks: plain adds, no iota/compare/select.
        @pl.when(k < num_blocks - 1)
        def _interior():
            accumulate(partial_sum(masked=False))

        # Only the final ragged block pays the masking cost.
        @pl.when(k == num_blocks - 1)
        def _tail():
            accumulate(partial_sum(masked=True))
    else:
        accumulate(partial_sum(masked=has_tail))

    @pl.when(k == num_blocks - 1)
    def _epilogue():
        # Mean over H*W (single small XLU lane-reduce), then the channel MLP.
        feat = jnp.sum(acc_ref[...], axis=-1) * (1.0 / hw)             # (B, C)

        # Linear(C -> Cr) + ReLU  (weights pre-transposed to (C, Cr)).
        h = jnp.dot(feat, w1_ref[...], preferred_element_type=jnp.float32)
        h = jnp.maximum(h + b1_ref[...], 0.0)                          # (B, Cr)

        # Linear(Cr -> C)  (weights pre-transposed to (Cr, C)).
        y = jnp.dot(h, w2_ref[...], preferred_element_type=jnp.float32)
        y = y + b2_ref[...]                                            # (B, C)

        # BatchNorm1d, training mode: batch statistics, biased variance.
        mu = jnp.mean(y, axis=0, keepdims=True)
        var = jnp.mean((y - mu) * (y - mu), axis=0, keepdims=True)
        out_ref[...] = (gamma_ref[...] * ((y - mu) * jax.lax.rsqrt(var + BN_EPS))
                        + beta_ref[...])


def _budgets():
    """Per-chip (max_block_bytes, vmem_limit_cap)."""
    try:
        cap = int(pltpu.get_tpu_info().vmem_capacity_bytes)
    except Exception:
        cap = 64 * 1024 * 1024
    if cap >= 100 * 1024 * 1024:                 # v5e / v6e: 128 MiB VMEM
        return 24 * 1024 * 1024, 96 * 1024 * 1024
    return 8 * 1024 * 1024, 48 * 1024 * 1024     # v7x: 64 MiB VMEM


def ca_layer(x, w1t, b1, w2t, b2, gamma, beta, *, max_block_bytes=None):
    """x: (B, C, H, W) f32 or bf16.  Returns channel attention (B, C, 1, 1)."""
    B, C, H, W = x.shape
    hw = H * W
    x2 = x.reshape(B, C, hw)

    chip_block_budget, vmem_cap = _budgets()
    if max_block_bytes is None:
        max_block_bytes = chip_block_budget

    itemsize = jnp.dtype(x.dtype).itemsize
    row_bytes = B * C * itemsize

    # Lane-dense spatial tile: multiple of 128 (or full extent when hw < 128),
    # bounded by the per-chip VMEM byte budget and the static-unroll cap.
    if hw < 128:
        tile_hw, lane_w = hw, hw
    else:
        budget_lanes = max(128, (max_block_bytes // row_bytes) // 128 * 128)
        tile_hw = min((hw // 128) * 128, budget_lanes, _MAX_SLICES * 128)
        lane_w = 128
    num_blocks = (hw + tile_hw - 1) // tile_hw

    block_bytes = row_bytes * tile_hw
    vmem_limit = int(min(vmem_cap,
                         max(32 * 1024 * 1024, 2 * block_bytes + (8 << 20))))

    full = lambda a: pl.BlockSpec(a.shape, lambda k: (0, 0))
    kernel = functools.partial(_ca_kernel, hw=hw, tile_hw=tile_hw,
                               lane_w=lane_w, num_blocks=num_blocks)

    att = pl.pallas_call(
        kernel,
        out_shape=jax.ShapeDtypeStruct((B, C), jnp.float32),
        grid_spec=pltpu.PrefetchScalarGridSpec(
            num_scalar_prefetch=0,
            grid=(num_blocks,),
            in_specs=[pl.BlockSpec((B, C, tile_hw), lambda k: (0, 0, k)),
                      full(w1t), full(b1), full(w2t), full(b2),
                      full(gamma), full(beta)],
            out_specs=pl.BlockSpec((B, C), lambda k: (0, 0)),
            scratch_shapes=[pltpu.VMEM((B, C, lane_w), jnp.float32)],
        ),
        compiler_params=pltpu.CompilerParams(
            dimension_semantics=("arbitrary",),
            vmem_limit_bytes=vmem_limit,
        ),
    )(x2, w1t, b1, w2t, b2, gamma, beta)

    return att[:, :, None, None]    # broadcastable to (B, C, H, W)


def _reference(x, w1t, b1, w2t, b2, gamma, beta):
    feat = jnp.mean(x, axis=(-2, -1))
    h = jnp.maximum(feat @ w1t + b1, 0.0)
    y = h @ w2t + b2
    mu = jnp.mean(y, axis=0, keepdims=True)
    var = jnp.mean((y - mu) ** 2, axis=0, keepdims=True)
    y = gamma * (y - mu) * jax.lax.rsqrt(var + BN_EPS) + beta
    return y[:, :, None, None]


if __name__ == "__main__":
    B, C = 2, 32
    reduction_ratio = 16
    Cr = C // reduction_ratio  # 2

    key = jax.random.PRNGKey(0)
    kx1, kx2, kx3, k1, kb1, k2, kb2 = jax.random.split(key, 7)

    # Deterministic synthetic params (PyTorch-Linear-like uniform init).
    lim1 = 1.0 / jnp.sqrt(C)
    w1 = jax.random.uniform(k1, (Cr, C), jnp.float32, -lim1, lim1)   # (out, in)
    b1 = jax.random.uniform(kb1, (1, Cr), jnp.float32, -lim1, lim1)
    lim2 = 1.0 / jnp.sqrt(Cr)
    w2 = jax.random.uniform(k2, (C, Cr), jnp.float32, -lim2, lim2)   # (out, in)
    b2 = jax.random.uniform(kb2, (1, C), jnp.float32, -lim2, lim2)
    gamma = jnp.ones((1, C), jnp.float32)   # BatchNorm1d weight
    beta = jnp.zeros((1, C), jnp.float32)   # BatchNorm1d bias

    # Linear weights pre-transposed so the kernel does (B, in) @ (in, out).
    w1t, w2t = w1.T, w2.T

    def check(x, ref_x=None, tol=1e-5, **kw):
        out = jax.block_until_ready(
            ca_layer(x, w1t, b1, w2t, b2, gamma, beta, **kw))
        ref = _reference(x if ref_x is None else ref_x,
                         w1t, b1, w2t, b2, gamma, beta)
        assert out.shape == (x.shape[0], x.shape[1], 1, 1)
        assert jnp.allclose(out, ref, atol=tol, rtol=tol), \
            float(jnp.max(jnp.abs(out - ref)))

    # 1) 16x16: single block, two unmasked 128-lane slices.
    x1 = jax.random.normal(kx1, (B, C, 16, 16), jnp.float32)
    check(x1)

    # 2) 16x15 with a tiny block budget: multi-block grid + masked ragged tail.
    x2 = jax.random.normal(kx2, (B, C, 16, 15), jnp.float32)
    check(x2, max_block_bytes=32 * 1024)

    # 3) 40x40: 12-slice unrolled fold, second block mostly masked.
    x3 = jax.random.normal(kx3, (B, C, 40, 40), jnp.float32)
    check(x3)

    # 4) bf16 input (halves HBM bytes of the read-bound pool), f32 accumulate.
    xb = x1.astype(jnp.bfloat16)
    check(xb, ref_x=xb.astype(jnp.float32), tol=1e-4)

    print("KERNEL_OK")
</pallas_src>

<mosaic_0001>
module attributes {stable_mosaic.version = 11 : i64} {
  func.func @_ca_kernel(%arg0: i32, %arg1: memref<2x32x256xf32, #tpu.memory_space<vmem>>, %arg2: memref<32x2xf32, #tpu.memory_space<vmem>>, %arg3: memref<1x2xf32, #tpu.memory_space<vmem>>, %arg4: memref<2x32xf32, #tpu.memory_space<vmem>>, %arg5: memref<1x32xf32, #tpu.memory_space<vmem>>, %arg6: memref<1x32xf32, #tpu.memory_space<vmem>>, %arg7: memref<1x32xf32, #tpu.memory_space<vmem>>, %arg8: memref<2x32xf32, #tpu.memory_space<vmem>>, %arg9: memref<2x32x128xf32, #tpu.memory_space<vmem>>) attributes {dimension_semantics = [#tpu.dimension_semantics<arbitrary>], iteration_bounds = array<i64: 1>, scalar_prefetch = 0 : i64, scratch_operands = 1 : i64, tpu.core_type = #tpu.core_type<tc>, window_params = [{transform_indices = @transform_0, window_bounds = array<i64: 2, 32, 256>}, {pipeline_mode = #tpu.pipeline_mode<synchronous>, transform_indices = @transform_1, window_bounds = array<i64: 32, 2>}, {pipeline_mode = #tpu.pipeline_mode<synchronous>, transform_indices = @transform_2, window_bounds = array<i64: 1, 2>}, {pipeline_mode = #tpu.pipeline_mode<synchronous>, transform_indices = @transform_3, window_bounds = array<i64: 2, 32>}, {pipeline_mode = #tpu.pipeline_mode<synchronous>, transform_indices = @transform_4, window_bounds = array<i64: 1, 32>}, {pipeline_mode = #tpu.pipeline_mode<synchronous>, transform_indices = @transform_5, window_bounds = array<i64: 1, 32>}, {pipeline_mode = #tpu.pipeline_mode<synchronous>, transform_indices = @transform_6, window_bounds = array<i64: 1, 32>}, {pipeline_mode = #tpu.pipeline_mode<synchronous>, transform_indices = @transform_7, window_bounds = array<i64: 2, 32>}]} {
    %c0 = arith.constant 0 : index
    %c0_0 = arith.constant 0 : index
    %c0_1 = arith.constant 0 : index
    %0 = vector.load %arg1[%c0, %c0_0, %c0_1] : memref<2x32x256xf32, #tpu.memory_space<vmem>>, vector<2x32x128xf32>
    %c0_2 = arith.constant 0 : index
    %c0_3 = arith.constant 0 : index
    %c128 = arith.constant 128 : index
    %1 = vector.load %arg1[%c0_2, %c0_3, %c128] : memref<2x32x256xf32, #tpu.memory_space<vmem>>, vector<2x32x128xf32>
    %2 = arith.addf %0, %1 : vector<2x32x128xf32>
    %c0_i32 = arith.constant 0 : i32
    %3 = arith.cmpi eq, %arg0, %c0_i32 : i32
    %4 = arith.extui %3 : i1 to i32
    %c0_i32_4 = arith.constant 0 : i32
    %5 = arith.cmpi ne, %4, %c0_i32_4 : i32
    scf.if %5 {
      %c0_9 = arith.constant 0 : index
      %c0_10 = arith.constant 0 : index
      %c0_11 = arith.constant 0 : index
      %12 = vector.load %arg9[%c0_9, %c0_10, %c0_11] : memref<2x32x128xf32, #tpu.memory_space<vmem>>, vector<2x32x128xf32>
      tpu.vector_store %arg9[%c0_9, %c0_10, %c0_11], %2 {strides = array<i32>} : memref<2x32x128xf32, #tpu.memory_space<vmem>>, vector<2x32x128xf32>,
    } else {
    }
    %c0_i32_5 = arith.constant 0 : i32
    %6 = arith.cmpi sgt, %arg0, %c0_i32_5 : i32
    %7 = arith.extui %6 : i1 to i32
    %c0_i32_6 = arith.constant 0 : i32
    %8 = arith.cmpi ne, %7, %c0_i32_6 : i32
    scf.if %8 {
      %c0_9 = arith.constant 0 : index
      %c0_10 = arith.constant 0 : index
      %c0_11 = arith.constant 0 : index
      %12 = vector.load %arg9[%c0_9, %c0_10, %c0_11] : memref<2x32x128xf32, #tpu.memory_space<vmem>>, vector<2x32x128xf32>
      %13 = arith.addf %12, %2 : vector<2x32x128xf32>
      %c0_12 = arith.constant 0 : index
      %c0_13 = arith.constant 0 : index
      %c0_14 = arith.constant 0 : index
      %14 = vector.load %arg9[%c0_12, %c0_13, %c0_14] : memref<2x32x128xf32, #tpu.memory_space<vmem>>, vector<2x32x128xf32>
      tpu.vector_store %arg9[%c0_12, %c0_13, %c0_14], %13 {strides = array<i32>} : memref<2x32x128xf32, #tpu.memory_space<vmem>>, vector<2x32x128xf32>,
    } else {
    }
    %c0_i32_7 = arith.constant 0 : i32
    %9 = arith.cmpi eq, %arg0, %c0_i32_7 : i32
    %10 = arith.extui %9 : i1 to i32
    %c0_i32_8 = arith.constant 0 : i32
    %11 = arith.cmpi ne, %10, %c0_i32_8 : i32
    scf.if %11 {
      %c0_9 = arith.constant 0 : index
      %c0_10 = arith.constant 0 : index
      %c0_11 = arith.constant 0 : index
      %12 = vector.load %arg9[%c0_9, %c0_10, %c0_11] : memref<2x32x128xf32, #tpu.memory_space<vmem>>, vector<2x32x128xf32>
      %cst = arith.constant dense<0.000000e+00> : vector<2x32xf32>
      %13 = vector.multi_reduction <add>, %12, %cst [2] : vector<2x32x128xf32> to vector<2x32xf32>
      %cst_12 = arith.constant 3.906250e-03 : f32
      %14 = vector.broadcast %cst_12 : f32 to vector<2x32xf32>
      %15 = arith.mulf %13, %14 : vector<2x32xf32>
      %c0_13 = arith.constant 0 : index
      %c0_14 = arith.constant 0 : index
      %16 = vector.load %arg2[%c0_13, %c0_14] : memref<32x2xf32, #tpu.memory_space<vmem>>, vector<32x2xf32>
      %cst_15 = arith.constant dense<0.000000e+00> : vector<2x2xf32>
      %17 = tpu.matmul %15, %16, %cst_15 {dimension_numbers = #tpu.dot_dimension_numbers<[1], [0], [0], [1], [0, 0, 1, 1], [], []>} : vector<2x32xf32>, vector<32x2xf32>, vector<2x2xf32> -> vector<2x2xf32>
      %c0_16 = arith.constant 0 : index
      %c0_17 = arith.constant 0 : index
      %18 = vector.load %arg3[%c0_16, %c0_17] : memref<1x2xf32, #tpu.memory_space<vmem>>, vector<1x2xf32>
      %19 = vector.broadcast %18 : vector<1x2xf32> to vector<2x2xf32>
      %20 = arith.addf %17, %19 : vector<2x2xf32>
      %cst_18 = arith.constant 0.000000e+00 : f32
      %21 = vector.broadcast %cst_18 : f32 to vector<2x2xf32>
      %22 = arith.maximumf %20, %21 : vector<2x2xf32>
      %c0_19 = arith.constant 0 : index
      %c0_20 = arith.constant 0 : index
      %23 = vector.load %arg4[%c0_19, %c0_20] : memref<2x32xf32, #tpu.memory_space<vmem>>, vector<2x32xf32>
      %cst_21 = arith.constant dense<0.000000e+00> : vector<2x32xf32>
      %24 = tpu.matmul %22, %23, %cst_21 {dimension_numbers = #tpu.dot_dimension_numbers<[1], [0], [0], [1], [0, 0, 1, 1], [], []>} : vector<2x2xf32>, vector<2x32xf32>, vector<2x32xf32> -> vector<2x32xf32>
      %c0_22 = arith.constant 0 : index
      %c0_23 = arith.constant 0 : index
      %25 = vector.load %arg5[%c0_22, %c0_23] : memref<1x32xf32, #tpu.memory_space<vmem>>, vector<1x32xf32>
      %26 = vector.broadcast %25 : vector<1x32xf32> to vector<2x32xf32>
      %27 = arith.addf %24, %26 : vector<2x32xf32>
      %cst_24 = arith.constant dense<0.000000e+00> : vector<32xf32>
      %28 = vector.multi_reduction <add>, %27, %cst_24 [0] : vector<2x32xf32> to vector<32xf32>
      %29 = vector.shape_cast %28 : vector<32xf32> to vector<1x32xf32>
      %cst_25 = arith.constant 2.000000e+00 : f32
      %30 = vector.broadcast %cst_25 : f32 to vector<1x32xf32>
      %31 = arith.divf %29, %30 : vector<1x32xf32>
      %32 = vector.broadcast %31 : vector<1x32xf32> to vector<2x32xf32>
      %33 = arith.subf %27, %32 : vector<2x32xf32>
      %34 = vector.broadcast %31 : vector<1x32xf32> to vector<2x32xf32>
      %35 = arith.subf %27, %34 : vector<2x32xf32>
      %36 = arith.mulf %33, %35 : vector<2x32xf32>
      %cst_26 = arith.constant dense<0.000000e+00> : vector<32xf32>
      %37 = vector.multi_reduction <add>, %36, %cst_26 [0] : vector<2x32xf32> to vector<32xf32>
      %38 = vector.shape_cast %37 : vector<32xf32> to vector<1x32xf32>
      %cst_27 = arith.constant 2.000000e+00 : f32
      %39 = vector.broadcast %cst_27 : f32 to vector<1x32xf32>
      %40 = arith.divf %38, %39 : vector<1x32xf32>
      %c0_28 = arith.constant 0 : index
      %c0_29 = arith.constant 0 : index
      %41 = vector.load %arg6[%c0_28, %c0_29] : memref<1x32xf32, #tpu.memory_space<vmem>>, vector<1x32xf32>
      %42 = vector.broadcast %31 : vector<1x32xf32> to vector<2x32xf32>
      %43 = arith.subf %27, %42 : vector<2x32xf32>
      %cst_30 = arith.constant 9.99999974E-6 : f32
      %44 = vector.broadcast %cst_30 : f32 to vector<1x32xf32>
      %45 = arith.addf %40, %44 : vector<1x32xf32>
      %46 = math.rsqrt %45 : vector<1x32xf32>
      %47 = vector.broadcast %46 : vector<1x32xf32> to vector<2x32xf32>
      %48 = arith.mulf %43, %47 : vector<2x32xf32>
      %49 = vector.broadcast %41 : vector<1x32xf32> to vector<2x32xf32>
      %50 = arith.mulf %49, %48 : vector<2x32xf32>
      %c0_31 = arith.constant 0 : index
      %c0_32 = arith.constant 0 : index
      %51 = vector.load %arg7[%c0_31, %c0_32] : memref<1x32xf32, #tpu.memory_space<vmem>>, vector<1x32xf32>
      %52 = vector.broadcast %51 : vector<1x32xf32> to vector<2x32xf32>
      %53 = arith.addf %50, %52 : vector<2x32xf32>
      %c0_33 = arith.constant 0 : index
      %c0_34 = arith.constant 0 : index
      %54 = vector.load %arg8[%c0_33, %c0_34] : memref<2x32xf32, #tpu.memory_space<vmem>>, vector<2x32xf32>
      tpu.vector_store %arg8[%c0_33, %c0_34], %53 {strides = array<i32>} : memref<2x32xf32, #tpu.memory_space<vmem>>, vector<2x32xf32>,
    } else {
    }
    return
  }
  func.func @transform_0(%arg0: i32) -> (i32, i32, i32) {
    %c0_i32 = arith.constant 0 : i32
    %c0_i32_0 = arith.constant 0 : i32
    %c0_i32_1 = arith.constant 0 : i32
    return %c0_i32, %c0_i32_0, %arg0 : i32, i32, i32
  }
  func.func @transform_1(%arg0: i32) -> (i32, i32) {
    %c0_i32 = arith.constant 0 : i32
    %c0_i32_0 = arith.constant 0 : i32
    %c0_i32_1 = arith.constant 0 : i32
    return %c0_i32, %c0_i32_0 : i32, i32
  }
  func.func @transform_2(%arg0: i32) -> (i32, i32) {
    %c0_i32 = arith.constant 0 : i32
    %c0_i32_0 = arith.constant 0 : i32
    %c0_i32_1 = arith.constant 0 : i32
    return %c0_i32, %c0_i32_0 : i32, i32
  }
  func.func @transform_3(%arg0: i32) -> (i32, i32) {
    %c0_i32 = arith.constant 0 : i32
    %c0_i32_0 = arith.constant 0 : i32
    %c0_i32_1 = arith.constant 0 : i32
    return %c0_i32, %c0_i32_0 : i32, i32
  }
  func.func @transform_4(%arg0: i32) -> (i32, i32) {
    %c0_i32 = arith.constant 0 : i32
    %c0_i32_0 = arith.constant 0 : i32
    %c0_i32_1 = arith.constant 0 : i32
    return %c0_i32, %c0_i32_0 : i32, i32
  }
  func.func @transform_5(%arg0: i32) -> (i32, i32) {
    %c0_i32 = arith.constant 0 : i32
    %c0_i32_0 = arith.constant 0 : i32
    %c0_i32_1 = arith.constant 0 : i32
    return %c0_i32, %c0_i32_0 : i32, i32
  }
  func.func @transform_6(%arg0: i32) -> (i32, i32) {
    %c0_i32 = arith.constant 0 : i32
    %c0_i32_0 = arith.constant 0 : i32
    %c0_i32_1 = arith.constant 0 : i32
    return %c0_i32, %c0_i32_0 : i32, i32
  }
  func.func @transform_7(%arg0: i32) -> (i32, i32) {
    %c0_i32 = arith.constant 0 : i32
    %c0_i32_0 = arith.constant 0 : i32
    %c0_i32_1 = arith.constant 0 : i32
    return %c0_i32, %c0_i32_0 : i32, i32
  }
}

</mosaic_0001>

<llo_original>
// kernel: tpu_custom_call.1
$region0: #{tpu_custom_call.1}
  #allocation0 [shape = 'u32[]', space=smem, size = 0x4, offset = 0x4, fixed_abs, tag = 'smem constant byte address 0x4 - core index']
  #allocation1 [shape = 'u32[72,128]{1,0:T(1,128)}', space=vmem, size = 0x9000, scoped, tag = 'internal scratch']
  #allocation2 [shape = 'f32[2,32,128]{2,1,0:T(8,128)}', space=vmem, size = 0x8000, scoped, tag = 'scratch operand']
  %s0 = inlined_call_operand.hbm [shape: f32[2,32,256], index: 0, kind: input, shape index: {}]
  %s1 = inlined_call_operand.vmem [shape: f32[32,2], index: 1, kind: input, shape index: {}]
  %s2 = inlined_call_operand.vmem [shape: f32[1,2], index: 2, kind: input, shape index: {}]
  %s3 = inlined_call_operand.vmem [shape: f32[2,32], index: 3, kind: input, shape index: {}]
  %s4 = inlined_call_operand.vmem [shape: f32[1,32], index: 4, kind: input, shape index: {}]
  %s5 = inlined_call_operand.vmem [shape: f32[1,32], index: 5, kind: input, shape index: {}]
  %s6 = inlined_call_operand.vmem [shape: f32[1,32], index: 6, kind: input, shape index: {}]
  %s7 = inlined_call_operand.hbm [shape: f32[2,32], index: 7, kind: output, shape index: {}]
  %s8 = sld [smem:[#allocation0]]
  $region54: #{tpu_custom_call.1} parent=0
    _
  %s10 = ssub.s32 1, %s8
  %s11 = scalar_select 0, %s10, %s8
  $region1: #{tpu_custom_call.1} parent=0
    #allocation3 [shape = 'u8[65536]{0}', space=vmem, size = 0x10000, scoped, tag = 'input window, operand 0, single buffered']
    #allocation4 [shape = 's32[1]{0}', space=sflag, size = 0x4, scoped, tag = 'scoped memory for tpu_custom_call.1']
    #allocation5 [shape = 's32[1]{0}', space=sflag, size = 0x4, scoped, tag = 'scoped memory for tpu_custom_call.1']
    #allocation6 [shape = 'u8[1024]{0}', space=vmem, size = 0x400, scoped, tag = 'output window, operand 0, single buffered']
    %12 = vsyncpa [#allocation4], 0
    %13 = vsyncpa [#allocation5], 0
    // Predicated region
    $region2: #{tpu_custom_call.1} parent=1 // pred_check
      _
    $region3: #{tpu_custom_call.1} parent=1 // pred_check_branch
      %15 = sbr.rel (0) target = $region5
    $region4: #{tpu_custom_call.1} parent=1 // pred_region
      %17 = vsyncadd [#allocation4], 0
      %s18 = sshll.u32 %s0, 4
      %s19 = int_to_ptr.hbm [resolvable:$true] %s18
      %s20 = sshll.u32 [#allocation3], 4
      %s21 = int_to_ptr.vmem [resolvable:$true] %s20
      %26 = dma.hbm_to_vmem [thread:$0]  %s19, 2048, %s21, [#allocation4], 256, 256, 16
    $region5: #{tpu_custom_call.1} parent=1 // pred_fallthru
      _
    // Predicated region
    $region6: #{tpu_custom_call.1} parent=1 // pred_check
      _
    $region7: #{tpu_custom_call.1} parent=1 // pred_check_branch
      %28 = sbr.rel (0) target = $region9
    $region8: #{tpu_custom_call.1} parent=1 // pred_region
      _
    $region9: #{tpu_custom_call.1} parent=1 // pred_fallthru
      _
    // Predicated region
    $region10: #{tpu_custom_call.1} parent=1 // pred_check
      _
    $region11: #{tpu_custom_call.1} parent=1 // pred_check_branch
      %30 = sbr.rel (0) target = $region13
    $region12: #{tpu_custom_call.1} parent=1 // pred_region
      _
    $region13: #{tpu_custom_call.1} parent=1 // pred_fallthru
      _
    // Predicated region
    $region14: #{tpu_custom_call.1} parent=1 // pred_check
      _
    $region15: #{tpu_custom_call.1} parent=1 // pred_check_branch
      %32 = sbr.rel (0) target = $region17
    $region16: #{tpu_custom_call.1} parent=1 // pred_region
      _
    $region17: #{tpu_custom_call.1} parent=1 // pred_fallthru
      _
    // Predicated region
    $region18: #{tpu_custom_call.1} parent=1 // pred_check
      _
    $region19: #{tpu_custom_call.1} parent=1 // pred_check_branch
      %34 = sbr.rel (0) target = $region21
    $region20: #{tpu_custom_call.1} parent=1 // pred_region
      _
    $region21: #{tpu_custom_call.1} parent=1 // pred_fallthru
      _
    // Predicated region
    $region22: #{tpu_custom_call.1} parent=1 // pred_check
      _
    $region23: #{tpu_custom_call.1} parent=1 // pred_check_branch
      %36 = sbr.rel (0) target = $region25
    $region24: #{tpu_custom_call.1} parent=1 // pred_region
      _
    $region25: #{tpu_custom_call.1} parent=1 // pred_fallthru
      _
    // Predicated region
    $region26: #{tpu_custom_call.1} parent=1 // pred_check
      _
    $region27: #{tpu_custom_call.1} parent=1 // pred_check_branch
      %38 = sbr.rel (0) target = $region29
    $region28: #{tpu_custom_call.1} parent=1 // pred_region
      _
    $region29: #{tpu_custom_call.1} parent=1 // pred_fallthru
      _
    // Predicated region
    $region30: #{tpu_custom_call.1} parent=1 // pred_check
      _
    $region31: #{tpu_custom_call.1} parent=1 // pred_check_branch
      %40 = sbr.rel (0) target = $region33
    $region32: #{tpu_custom_call.1} parent=1 // pred_region
      %42 = dma.done [#allocation4], 2048
    $region33: #{tpu_custom_call.1} parent=1 // pred_fallthru
      _
    %v43 = vld [vmem:[#allocation3] sm:$0xff]
    %v44 = vld [vmem:[#allocation3 + $0x10] sm:$0xff]
    %v45 = vld [vmem:[#allocation3 + $0x20] sm:$0xff]
    %v46 = vld [vmem:[#allocation3 + $0x30] sm:$0xff]
    %v47 = vld [vmem:[#allocation3 + $0x40] sm:$0xff]
    %v48 = vld [vmem:[#allocation3 + $0x50] sm:$0xff]
    %v49 = vld [vmem:[#allocation3 + $0x60] sm:$0xff]
    %v50 = vld [vmem:[#allocation3 + $0x70] sm:$0xff]
    %v51 = vld [vmem:[#allocation3 + $0x8] sm:$0xff]
    %v52 = vld [vmem:[#allocation3 + $0x18] sm:$0xff]
    %v53 = vld [vmem:[#allocation3 + $0x28] sm:$0xff]
    %v54 = vld [vmem:[#allocation3 + $0x38] sm:$0xff]
    %v55 = vld [vmem:[#allocation3 + $0x48] sm:$0xff]
    %v56 = vld [vmem:[#allocation3 + $0x58] sm:$0xff]
    %v57 = vld [vmem:[#allocation3 + $0x68] sm:$0xff]
    %v58 = vld [vmem:[#allocation3 + $0x78] sm:$0xff]
    %v59 = vadd.f32 %v43, %v51
    %v60 = vadd.f32 %v44, %v52
    %v61 = vadd.f32 %v45, %v53
    %v62 = vadd.f32 %v46, %v54
    %v63 = vadd.f32 %v47, %v55
    %v64 = vadd.f32 %v48, %v56
    %v65 = vadd.f32 %v49, %v57
    %v66 = vadd.f32 %v50, %v58
    %p67 = scmp.eq.s32.totalorder 0, 0
    // Predicated region
    $region34: #{tpu_custom_call.1} parent=1 // pred_check
      %p68 = pneg %p67
    $region35: #{tpu_custom_call.1} parent=1 // pred_check_branch
      %70 = sbr.rel (%p68) target = $region37
    $region36: #{tpu_custom_call.1} parent=1 // pred_region
      %71 = vst [vmem:[#allocation2] sm:$0xff] %v59
      %72 = vst [vmem:[#allocation2 + $0x8] sm:$0xff] %v60
      %73 = vst [vmem:[#allocation2 + $0x10] sm:$0xff] %v61
      %74 = vst [vmem:[#allocation2 + $0x18] sm:$0xff] %v62
      %75 = vst [vmem:[#allocation2 + $0x20] sm:$0xff] %v63
      %76 = vst [vmem:[#allocation2 + $0x28] sm:$0xff] %v64
      %77 = vst [vmem:[#allocation2 + $0x30] sm:$0xff] %v65
      %78 = vst [vmem:[#allocation2 + $0x38] sm:$0xff] %v66
    $region37: #{tpu_custom_call.1} parent=1 // pred_fallthru
      _
    %p79 = scmp.gt.s32.totalorder 0, 0
    // Predicated region
    $region38: #{tpu_custom_call.1} parent=1 // pred_check
      %p80 = pneg %p79
    $region39: #{tpu_custom_call.1} parent=1 // pred_check_branch
      %82 = sbr.rel (%p80) target = $region41
    $region40: #{tpu_custom_call.1} parent=1 // pred_region
      %v83 = vld [vmem:[#allocation2] sm:$0xff]
      %v84 = vld [vmem:[#allocation2 + $0x8] sm:$0xff]
      %v85 = vld [vmem:[#allocation2 + $0x10] sm:$0xff]
      %v86 = vld [vmem:[#allocation2 + $0x18] sm:$0xff]
      %v87 = vld [vmem:[#allocation2 + $0x20] sm:$0xff]
      %v88 = vld [vmem:[#allocation2 + $0x28] sm:$0xff]
      %v89 = vld [vmem:[#allocation2 + $0x30] sm:$0xff]
      %v90 = vld [vmem:[#allocation2 + $0x38] sm:$0xff]
      %v91 = vadd.f32 %v83, %v59
      %v92 = vadd.f32 %v84, %v60
      %v93 = vadd.f32 %v85, %v61
      %v94 = vadd.f32 %v86, %v62
      %v95 = vadd.f32 %v87, %v63
      %v96 = vadd.f32 %v88, %v64
      %v97 = vadd.f32 %v89, %v65
      %v98 = vadd.f32 %v90, %v66
      %99 = vst [vmem:[#allocation2] sm:$0xff] %v91
      %100 = vst [vmem:[#allocation2 + $0x8] sm:$0xff] %v92
      %101 = vst [vmem:[#allocation2 + $0x10] sm:$0xff] %v93
      %102 = vst [vmem:[#allocation2 + $0x18] sm:$0xff] %v94
      %103 = vst [vmem:[#allocation2 + $0x20] sm:$0xff] %v95
      %104 = vst [vmem:[#allocation2 + $0x28] sm:$0xff] %v96
      %105 = vst [vmem:[#allocation2 + $0x30] sm:$0xff] %v97
      %106 = vst [vmem:[#allocation2 + $0x38] sm:$0xff] %v98
    $region41: #{tpu_custom_call.1} parent=1 // pred_fallthru
      _
    // Predicated region
    $region42: #{tpu_custom_call.1} parent=1 // pred_check
      %p107 = pneg %p67
    $region43: #{tpu_custom_call.1} parent=1 // pred_check_branch
      %109 = sbr.rel (%p107) target = $region45
    $region44: #{tpu_custom_call.1} parent=1 // pred_region
      %v110 = vld [vmem:[#allocation2] sm:$0xff]
      %v111 = vld [vmem:[#allocation2 + $0x8] sm:$0xff]
      %v112 = vld [vmem:[#allocation2 + $0x10] sm:$0xff]
      %v113 = vld [vmem:[#allocation2 + $0x18] sm:$0xff]
      %v114 = vld [vmem:[#allocation2 + $0x20] sm:$0xff]
      %v115 = vld [vmem:[#allocation2 + $0x28] sm:$0xff]
      %v116 = vld [vmem:[#allocation2 + $0x30] sm:$0xff]
      %v117 = vld [vmem:[#allocation2 + $0x38] sm:$0xff]
      %118 = vadd.xlane.f32.xlu0 %v110
      %v119 = vpop.xlane.xlu0 %118
      %120 = vadd.xlane.f32.xlu0 %v111
      %v121 = vpop.xlane.xlu0 %120
      %122 = vadd.xlane.f32.xlu0 %v112
      %v123 = vpop.xlane.xlu0 %122
      %124 = vadd.xlane.f32.xlu0 %v113
      %v125 = vpop.xlane.xlu0 %124
      %126 = vadd.xlane.f32.xlu0 %v114
      %v127 = vpop.xlane.xlu0 %126
      %128 = vadd.xlane.f32.xlu0 %v115
      %v129 = vpop.xlane.xlu0 %128
      %130 = vadd.xlane.f32.xlu0 %v116
      %v131 = vpop.xlane.xlu0 %130
      %132 = vadd.xlane.f32.xlu0 %v117
      %v133 = vpop.xlane.xlu0 %132
      %v134 = vmul.f32 %v119, 0.00390625
      %v135 = vmul.f32 %v121, 0.00390625
      %v136 = vmul.f32 %v123, 0.00390625
      %v137 = vmul.f32 %v125, 0.00390625
      %v138 = vmul.f32 %v127, 0.00390625
      %v139 = vmul.f32 %v129, 0.00390625
      %v140 = vmul.f32 %v131, 0.00390625
      %v141 = vmul.f32 %v133, 0.00390625
      %v142 = vld [vmem:[%s1] sm:$0xff]
      %v143 = vld [vmem:[%s1 + $0x8] sm:$0xff]
      %v144 = vld [vmem:[%s1 + $0x10] sm:$0xff]
      %v145 = vld [vmem:[%s1 + $0x18] sm:$0xff]
      %v146 = vld [vmem:[%s2] sm:$0x1]
      %v148 = vperm.slane %v146, 0
      %v158 = vlaneseq
      %v159 = vand.u32 %v158, 127
      %v160 = vperm.slane %v134, %v159
      %v161 = vadd.s32 %v159, 4294967288
      %v162 = vperm.slane %v135, %v161
      %vm163 = vcmask 130112
      %v164 = vsel %vm163, %v162, %v160
      %v165 = vadd.s32 %v159, 4294967280
      %v166 = vperm.slane %v136, %v165
      %vm167 = vcmask 195712
      %v168 = vsel %vm167, %v166, %v164
      %v169 = vadd.s32 %v159, 4294967272
      %v170 = vperm.slane %v137, %v169
      %vm171 = vcmask 261312
      %v172 = vsel %vm171, %v170, %v168
      %v173 = vperm.slane %v138, %v159
      %v174 = vperm.slane %v139, %v161
      %v175 = vsel %vm163, %v174, %v173
      %v176 = vperm.slane %v140, %v165
      %v177 = vsel %vm167, %v176, %v175
      %v178 = vperm.slane %v141, %v169
      %v179 = vsel %vm171, %v178, %v177
      %vm180 = vcmask 1041409
      %v181 = vsel %vm180, %v179, %v172
      %vm182 = vcmask 261120
      %v183 = vsel %vm182, %v181, 0
      %185 = vmatpush.msra.mxu0 0.0
      %186 = vmatpush.msra.mxu0 0.0
      %187 = vmatpush.msra.mxu0 0.0
      %188 = vmatpush.msra.mxu0 0.0
      %189 = vmatpush.msra.mxu0 0.0
      %190 = vmatpush.msra.mxu0 0.0
      %191 = vmatpush.msra.mxu0 0.0
      %192 = vmatpush.msra.mxu0 0.0
      %193 = vmatpush.msra.mxu0 0.0
      %194 = vmatpush.msra.mxu0 0.0
      %195 = vmatpush.msra.mxu0 0.0
      %196 = vmatpush.msra.mxu0 0.0
      %197 = vmatpush.msra.mxu0 %v145
      %198 = vmatpush.msra.mxu0 %v144
      %199 = vmatpush.msra.mxu0 %v143
      %200 = vmatpush.msra.mxu0 %v142
      %201 = vmatmul.f32.gmra.mxu0 %v183
      %v202 = vpop.f32.mrf.mxu0
      %v203 = vadd.f32 %v148, %v202
      %204 = vdwg.mxu0
      %v205 = vmax.f32 %v203, 0.0
      %v206 = vld [vmem:[%s3] sm:$0x3]
      %v207 = vld [vmem:[%s4] sm:$0x1]
      %v209 = vperm.slane %v207, 0
      %vm211 = vcmask 15360
      %v213 = vsel %vm211, %v205, 0
      %vm215 = vcmask 1041408
      %v217 = vsel %vm215, %v206, 0
      %219 = vmatpush.msra.mxu0 0.0
      %220 = vmatpush.msra.mxu0 0.0
      %221 = vmatpush.msra.mxu0 0.0
      %222 = vmatpush.msra.mxu0 0.0
      %223 = vmatpush.msra.mxu0 0.0
      %224 = vmatpush.msra.mxu0 0.0
      %225 = vmatpush.msra.mxu0 0.0
      %226 = vmatpush.msra.mxu0 0.0
      %227 = vmatpush.msra.mxu0 0.0
      %228 = vmatpush.msra.mxu0 0.0
      %229 = vmatpush.msra.mxu0 0.0
      %230 = vmatpush.msra.mxu0 0.0
      %231 = vmatpush.msra.mxu0 0.0
      %232 = vmatpush.msra.mxu0 0.0
      %233 = vmatpush.msra.mxu0 0.0
      %234 = vmatpush.msra.mxu0 %v217
      %235 = vmatmul.f32.gmra.mxu0 %v213
      %v236 = vpop.f32.mrf.mxu0
      %v237 = vadd.f32 %v209, %v236
      %238 = vdwg.mxu0
      %vm239 = vcmask 254976
      %v240 = vsel %vm239, %v237, 0.0
      %v241 = vrot.slane %v240, 4
      %v242 = vadd.f32 %v240, %v241
      %v243 = vrot.slane %v242, 2
      %v244 = vadd.f32 %v242, %v243
      %v245 = vrot.slane %v244, 1
      %v246 = vadd.f32 %v244, %v245
      %v247 = vrcp.pop 2.0
      %v248 = vmul.f32 2.0, %v247
      %v249 = vsub.f32 1.0, %v248
      %v250 = vmul.f32 %v247, %v249
      %v251 = vadd.f32 %v247, %v250
      %vm252 = vweird.f32 %v247
      %v253 = vsel %vm252, %v247, %v251
      %v254 = vmul.f32 %v246, %v253
      %v255 = vsub.f32 %v237, %v254
      %v256 = vmul.f32 %v255, %v255
      %v257 = vsel %vm239, %v256, 0.0
      %v258 = vrot.slane %v257, 4
      %v259 = vadd.f32 %v257, %v258
      %v260 = vrot.slane %v259, 2
      %v261 = vadd.f32 %v259, %v260
      %v262 = vrot.slane %v261, 1
      %v263 = vadd.f32 %v261, %v262
      %v264 = vmul.f32 %v263, %v253
      %v265 = vld [vmem:[%s5] sm:$0x1]
      %v266 = vadd.f32 %v264, 1e-05
      %v267 = vrsqrt.pop %v266
      %v268 = vmul.f32 %v267, %v266
      %v269 = vmul.f32 %v268, %v267
      %v270 = vmul.f32 0.5, %v269
      %v271 = vsub.f32 1.5, %v270
      %v272 = vmul.f32 %v267, %v271
      %vm273 = vweird.f32 %v266
      %vm274 = vweird.f32 %v267
      %vm275 = vmor %vm273, %vm274
      %v276 = vsel %vm275, %v267, %v272
      %v277 = vmul.f32 %v255, %v276
      %v279 = vperm.slane %v265, 0
      %v281 = vmul.f32 %v279, %v277
      %v282 = vld [vmem:[%s6] sm:$0x1]
      %v284 = vperm.slane %v282, 0
      %v286 = vadd.f32 %v281, %v284
      %287 = vst.msk [vmem:[#allocation6] sm:$0x3] %vm239, %v286
    $region45: #{tpu_custom_call.1} parent=1 // pred_fallthru
      _
    // Predicated region
    $region46: #{tpu_custom_call.1} parent=1 // pred_check
      _
    $region47: #{tpu_custom_call.1} parent=1 // pred_check_branch
      %289 = sbr.rel (0) target = $region49
    $region48: #{tpu_custom_call.1} parent=1 // pred_region
      %291 = vsyncadd [#allocation5], 0
      %s293 = sshll.u32 [#allocation6], 4
      %s294 = int_to_ptr.vmem [resolvable:$true] %s293
      %s295 = sshll.u32 %s7, 4
      %s296 = int_to_ptr.hbm [resolvable:$true] %s295
      %298 = dma.vmem_to_hbm [thread:$0]  %s294, 32, %s296, [#allocation5]
    $region49: #{tpu_custom_call.1} parent=1 // pred_fallthru
      _
    // Predicated region
    $region50: #{tpu_custom_call.1} parent=1 // pred_check
      _
    $region51: #{tpu_custom_call.1} parent=1 // pred_check_branch
      %300 = sbr.rel (0) target = $region53
    $region52: #{tpu_custom_call.1} parent=1 // pred_region
      %302 = dma.done [#allocation5], 32
    $region53: #{tpu_custom_call.1} parent=1 // pred_fallthru
      _
    %303 = vsyncpa [#allocation4], 1
    %304 = vsyncpa [#allocation5], 1

</llo_original>
